<compile_context>
chip_gen: v7x
topology: tpu7x:2x2x1
jax: 0.10.0
libtpu: 0.0.40
codegen_flags: <defaults>
</compile_context>

<pallas_src>
import functools

import jax
import jax.numpy as jnp
from jax.experimental import pallas as pl
from jax.experimental.pallas import tpu as pltpu

EPS = 1e-7
_LANE = 128
_SUBLANE = 8
# ~4 MiB per input block -> 2 inputs x 2 pipeline buffers ~= 16 MiB of VMEM.
_TARGET_BLOCK_BYTES = 4 << 20


def _round_up(x, m):
    return (x + m - 1) // m * m


def _device_kind():
    try:
        return jax.devices()[0].device_kind.lower()
    except Exception:
        return ""


def _num_tensorcores():
    """TensorCores one pallas_call can use via a 'parallel' grid axis."""
    try:
        info = pltpu.get_tpu_info()
        for name in ("num_cores", "core_count", "num_tensorcores"):
            v = getattr(info, name, None)
            if v is not None:
                v = int(v)
                if v >= 1:
                    return v
    except Exception:
        pass
    kind = _device_kind()
    return 2 if ("v7" in kind or "7x" in kind) else 1


def _vmem_capacity_bytes():
    try:
        info = pltpu.get_tpu_info()
        for name in ("vmem_capacity_bytes", "vmem_size_bytes"):
            v = getattr(info, name, None)
            if v is not None:
                v = int(v)
                if v > 0:
                    return v
    except Exception:
        pass
    kind = _device_kind()
    return (64 << 20) if ("v7" in kind or "7x" in kind) else (128 << 20)


def _sublane_fill_factor(bc, hw, itemsize):
    """Smallest k dividing hw such that bc*k rows fill vreg sublanes (free
    contiguous reshape in the wrapper). Returns 1 if no useful divisor."""
    rows_target = 8 if itemsize >= 4 else 16
    if bc >= rows_target or hw < 2 * _LANE:
        return 1
    best = 1
    for k in range(2, 257):
        if hw % k != 0 or hw // k < _LANE:
            continue
        best = k
        if bc * k >= rows_target:
            break
    return best


def _partial_sums_kernel(pred_ref, targ_ref, inter_ref, psum_ref, tsum_ref,
                         *, tile, hw, t_inner, real_blocks, needs_mask):
    """pred/targ refs: (row_block, tile) blocks of the flattened inputs.
    inter/psum/tsum refs: (1, row_block, 1) f32 accumulators revisited across
    the last (reduction / voxel) grid axis."""
    p_idx = pl.program_id(0)   # TensorCore partition of the voxel axis
    t_idx = pl.program_id(2)   # reduction step along the voxel axis

    @pl.when(t_idx == 0)
    def _init():
        inter_ref[...] = jnp.zeros_like(inter_ref)
        psum_ref[...] = jnp.zeros_like(psum_ref)
        tsum_ref[...] = jnp.zeros_like(tsum_ref)

    p = pred_ref[...].astype(jnp.float32)
    t = targ_ref[...].astype(jnp.float32)

    def _accumulate(pv, tv):
        inter_ref[...] += jnp.sum(pv * tv, axis=1, keepdims=True)[None]
        psum_ref[...] += jnp.sum(pv, axis=1, keepdims=True)[None]
        tsum_ref[...] += jnp.sum(tv, axis=1, keepdims=True)[None]

    if needs_mask:
        # Invariant: data comes from the *clamped* block index (in_map), the
        # mask uses the *unclamped* index -> ghost tiles (blk >= real_blocks)
        # are fully zeroed and the real tail block masks its ragged end.
        blk = p_idx * t_inner + t_idx
        is_tail = blk >= real_blocks - 1

        @pl.when(jnp.logical_not(is_tail))
        def _full():
            _accumulate(p, t)

        @pl.when(is_tail)
        def _tail():
            col = blk * tile + jax.lax.broadcasted_iota(jnp.int32, p.shape, 1)
            m = col < hw
            _accumulate(jnp.where(m, p, 0.0), jnp.where(m, t, 0.0))
    else:
        _accumulate(p, t)


def weighted_per_class_loss(prediction, target, penalty_weights,
                            target_block_bytes=_TARGET_BLOCK_BYTES):
    """prediction/target: (B, C, *spatial); penalty_weights: (C,)."""
    shape = prediction.shape
    assert target.shape == shape, (target.shape, shape)
    B, C = int(shape[0]), int(shape[1])
    hw = 1
    for s in shape[2:]:
        hw *= int(s)
    bc = B * C

    size_item = max(prediction.dtype.itemsize, target.dtype.itemsize)
    pack_item = min(prediction.dtype.itemsize, target.dtype.itemsize)

    # Fill vreg sublanes for tiny class/batch counts (free contiguous reshape).
    k = _sublane_fill_factor(bc, hw, pack_item)
    rows = bc * k
    hw_eff = hw // k

    # Free (contiguous) reshapes -- no transpose, no host-side dtype cast.
    pred2d = prediction.reshape(rows, hw_eff)
    targ2d = target.reshape(rows, hw_eff)

    # Row (sublane) blocking: keep each input block within the byte budget even
    # for very large B*C (guards v7x's 64 MiB physical VMEM).
    max_rows_per_block = max(_SUBLANE, target_block_bytes // (_LANE * size_item))
    if rows <= max_rows_per_block:
        row_block = rows
    else:
        row_block = rows                     # fallback: no row tiling
        d = (max_rows_per_block // _SUBLANE) * _SUBLANE
        while d >= _SUBLANE:
            if rows % d == 0:
                row_block = d
                break
            d -= _SUBLANE
    n_row_blocks = rows // row_block

    # Lane (voxel) tile: ~target_block_bytes per input block.
    tile = target_block_bytes // max(1, row_block * size_item)
    tile = max(_LANE, (tile // _LANE) * _LANE)
    tile = min(tile, _round_up(hw_eff, _LANE))

    real_blocks = pl.cdiv(hw_eff, tile)
    n_par = max(1, min(_num_tensorcores(), real_blocks))   # 2 on v7x, 1 v5e/v6e
    t_inner = pl.cdiv(real_blocks, n_par)
    total_blocks = n_par * t_inner
    needs_mask = (hw_eff % tile != 0) or (total_blocks != real_blocks)

    def in_map(pi, ri, ti):
        blk = pi * t_inner + ti
        if total_blocks != real_blocks:
            blk = jnp.minimum(blk, real_blocks - 1)  # clamp ghost tiles (masked)
        return (ri, blk)

    def out_map(pi, ri, ti):
        return (pi, ri, 0)

    kernel = functools.partial(
        _partial_sums_kernel, tile=tile, hw=hw_eff, t_inner=t_inner,
        real_blocks=real_blocks, needs_mask=needs_mask)

    out_sds = jax.ShapeDtypeStruct((n_par, rows, 1), jnp.float32)

    # Explicit, generation-aware VMEM budget (v5e default scoped limit is only
    # 16 MiB; v7x physical per-TC VMEM is 64 MiB -> keep <= 32 MiB there).
    in_block_bytes = row_block * tile * (prediction.dtype.itemsize
                                         + target.dtype.itemsize)
    vmem_needed = 2 * in_block_bytes + 2 * 3 * row_block * 4 + (4 << 20)
    cap = _vmem_capacity_bytes()
    if cap >= (96 << 20):          # v5e / v6e: 128 MiB physical
        vmem_limit = min(max(vmem_needed, 48 << 20), 64 << 20)
    else:                          # v7x: 64 MiB physical per TensorCore
        vmem_limit = min(max(vmem_needed, 24 << 20), 32 << 20)
    vmem_limit = int(min(max(vmem_limit, vmem_needed), cap))

    flops = int(4 * rows * hw_eff)
    bytes_accessed = int(pred2d.size * pred2d.dtype.itemsize
                         + targ2d.size * targ2d.dtype.itemsize
                         + 3 * n_par * rows * 4)

    inter_p, psum_p, tsum_p = pl.pallas_call(
        kernel,
        out_shape=(out_sds, out_sds, out_sds),
        grid_spec=pltpu.PrefetchScalarGridSpec(
            num_scalar_prefetch=0,
            grid=(n_par, n_row_blocks, t_inner),
            in_specs=[
                pl.BlockSpec((row_block, tile), in_map),
                pl.BlockSpec((row_block, tile), in_map),
            ],
            out_specs=[
                pl.BlockSpec((1, row_block, 1), out_map),
                pl.BlockSpec((1, row_block, 1), out_map),
                pl.BlockSpec((1, row_block, 1), out_map),
            ],
        ),
        compiler_params=pltpu.CompilerParams(
            dimension_semantics=("parallel", "parallel", "arbitrary"),
            vmem_limit_bytes=vmem_limit),
        cost_estimate=pl.CostEstimate(
            flops=flops, transcendentals=0, bytes_accessed=bytes_accessed),
    )(pred2d, targ2d)

    # Tiny finalize in JAX: (n_par, B*C*k, 1) partials -> per-class sums.
    def combine(x):
        return x.reshape(n_par, B, C, k).sum(axis=(0, 1, 3))

    inter_c = combine(inter_p)
    psum_c = combine(psum_p)
    tsum_c = combine(tsum_p)

    w = jnp.asarray(penalty_weights, jnp.float32).reshape(C)
    dice = (2.0 * inter_c + EPS) / (psum_c + tsum_c + EPS)   # per-class Dice
    return jnp.sum((1.0 - dice) * w) / C


class AbstractLossFunction:
    """JAX/Pallas port of GANDLF.losses.loss_interface.AbstractLossFunction."""

    def __init__(self, params: dict):
        self.params = params
        self.num_classes = len(params["model"]["class_list"])
        self._initialize_penalty_weights()

    def _initialize_penalty_weights(self):
        default_penalty_weights = jnp.ones((self.num_classes,), jnp.float32)
        pw = self.params.get("penalty_weights", default_penalty_weights)
        self.penalty_weights = jnp.asarray(pw, jnp.float32)

    def forward(self, prediction, target):
        # TODO(synk): forward() is abstract in the reference; realized here as
        # the canonical GANDLF weighted per-class Dice reduction (per-class
        # dice over the batch-flattened voxel axis) used by its subclasses.
        return weighted_per_class_loss(prediction, target, self.penalty_weights)

    __call__ = forward


def _reference(prediction, target, weights):
    # Pure-JAX reference for sanity checking.
    C = prediction.shape[1]
    p = jnp.moveaxis(prediction, 1, 0).reshape(C, -1).astype(jnp.float32)
    t = jnp.moveaxis(target, 1, 0).reshape(C, -1).astype(jnp.float32)
    inter = jnp.sum(p * t, axis=1)
    dice = (2.0 * inter + EPS) / (jnp.sum(p, axis=1) + jnp.sum(t, axis=1) + EPS)
    return jnp.sum((1.0 - dice) * jnp.asarray(weights, jnp.float32)) / C


if __name__ == "__main__":
    key = jax.random.PRNGKey(0)

    def check(pred, targ, params, **kw):
        loss_fn = AbstractLossFunction(params)
        got = jax.block_until_ready(
            weighted_per_class_loss(pred, targ, loss_fn.penalty_weights, **kw))
        ref = jax.block_until_ready(_reference(pred, targ, loss_fn.penalty_weights))
        assert jnp.allclose(got, ref, rtol=1e-4, atol=1e-5), (got, ref)

    # Case 1: canonical small NCHW softmax/one-hot pair through the class API.
    B, C, H, W = 2, 4, 16, 16
    k1, k2 = jax.random.split(key)
    pred = jax.nn.softmax(jax.random.normal(k1, (B, C, H, W), jnp.float32), axis=1)
    labels = jax.random.randint(k2, (B, H, W), 0, C)
    targ = jax.nn.one_hot(labels, C, axis=1, dtype=jnp.float32)
    params = {"model": {"class_list": list(range(C))}}
    loss_fn = AbstractLossFunction(params)
    loss = jax.block_until_ready(loss_fn(pred, targ))
    ref = jax.block_until_ready(_reference(pred, targ, loss_fn.penalty_weights))
    assert jnp.allclose(loss, ref, rtol=1e-4, atol=1e-5), (loss, ref)

    # Case 2: ragged voxel tail + multi-step reduction (forced tiny block size
    # exercises the accumulator init and the gated tail masking).
    k3, k4 = jax.random.split(k2)
    pred2 = jax.nn.softmax(jax.random.normal(k3, (2, 4, 15, 15), jnp.float32), axis=1)
    targ2 = jax.nn.one_hot(jax.random.randint(k4, (2, 15, 15), 0, 4), 4, axis=1,
                           dtype=jnp.float32)
    check(pred2, targ2,
          {"model": {"class_list": [0, 1, 2, 3]},
           "penalty_weights": [1.0, 2.0, 0.5, 1.5]},
          target_block_bytes=4096)

    # Case 3: bf16 inputs + tiny class count (sublane-fill reshape, in-kernel cast).
    k5, k6 = jax.random.split(k4)
    pred3 = jax.nn.softmax(jax.random.normal(k5, (1, 3, 16, 16), jnp.float32),
                           axis=1).astype(jnp.bfloat16)
    targ3 = jax.nn.one_hot(jax.random.randint(k6, (1, 16, 16), 0, 3), 3, axis=1,
                           dtype=jnp.bfloat16)
    check(pred3, targ3, {"model": {"class_list": [0, 1, 2]}})

    print("KERNEL_OK")
</pallas_src>

<mosaic_0001>
module attributes {stable_mosaic.version = 11 : i64} {
  func.func @_partial_sums_kernel(%arg0: i32, %arg1: i32, %arg2: i32, %arg3: memref<8x256xf32, #tpu.memory_space<vmem>>, %arg4: memref<8x256xf32, #tpu.memory_space<vmem>>, %arg5: memref<1x8x1xf32, #tpu.memory_space<vmem>>, %arg6: memref<1x8x1xf32, #tpu.memory_space<vmem>>, %arg7: memref<1x8x1xf32, #tpu.memory_space<vmem>>) attributes {dimension_semantics = [#tpu.dimension_semantics<parallel>, #tpu.dimension_semantics<parallel>, #tpu.dimension_semantics<arbitrary>], iteration_bounds = array<i64: 1, 1, 1>, scalar_prefetch = 0 : i64, scratch_operands = 0 : i64, tpu.core_type = #tpu.core_type<tc>, window_params = [{transform_indices = @transform_0, window_bounds = array<i64: 8, 256>}, {transform_indices = @transform_1, window_bounds = array<i64: 8, 256>}, {transform_indices = @transform_2, window_bounds = array<i64: 1, 8, 1>}, {transform_indices = @transform_3, window_bounds = array<i64: 1, 8, 1>}, {transform_indices = @transform_4, window_bounds = array<i64: 1, 8, 1>}]} {
    %c0_i32 = arith.constant 0 : i32
    %0 = arith.cmpi eq, %arg2, %c0_i32 : i32
    %1 = arith.extui %0 : i1 to i32
    %c0_i32_0 = arith.constant 0 : i32
    %2 = arith.cmpi ne, %1, %c0_i32_0 : i32
    scf.if %2 {
      %cst_24 = arith.constant 0.000000e+00 : f32
      %24 = vector.broadcast %cst_24 : f32 to vector<1x8x1xf32>
      %c0_25 = arith.constant 0 : index
      %c0_26 = arith.constant 0 : index
      %c0_27 = arith.constant 0 : index
      %25 = vector.load %arg5[%c0_25, %c0_26, %c0_27] : memref<1x8x1xf32, #tpu.memory_space<vmem>>, vector<1x8x1xf32>
      tpu.vector_store %arg5[%c0_25, %c0_26, %c0_27], %24 {strides = array<i32>} : memref<1x8x1xf32, #tpu.memory_space<vmem>>, vector<1x8x1xf32>,
      %cst_28 = arith.constant 0.000000e+00 : f32
      %26 = vector.broadcast %cst_28 : f32 to vector<1x8x1xf32>
      %c0_29 = arith.constant 0 : index
      %c0_30 = arith.constant 0 : index
      %c0_31 = arith.constant 0 : index
      %27 = vector.load %arg6[%c0_29, %c0_30, %c0_31] : memref<1x8x1xf32, #tpu.memory_space<vmem>>, vector<1x8x1xf32>
      tpu.vector_store %arg6[%c0_29, %c0_30, %c0_31], %26 {strides = array<i32>} : memref<1x8x1xf32, #tpu.memory_space<vmem>>, vector<1x8x1xf32>,
      %cst_32 = arith.constant 0.000000e+00 : f32
      %28 = vector.broadcast %cst_32 : f32 to vector<1x8x1xf32>
      %c0_33 = arith.constant 0 : index
      %c0_34 = arith.constant 0 : index
      %c0_35 = arith.constant 0 : index
      %29 = vector.load %arg7[%c0_33, %c0_34, %c0_35] : memref<1x8x1xf32, #tpu.memory_space<vmem>>, vector<1x8x1xf32>
      tpu.vector_store %arg7[%c0_33, %c0_34, %c0_35], %28 {strides = array<i32>} : memref<1x8x1xf32, #tpu.memory_space<vmem>>, vector<1x8x1xf32>,
    } else {
    }
    %c0 = arith.constant 0 : index
    %c0_1 = arith.constant 0 : index
    %3 = vector.load %arg3[%c0, %c0_1] : memref<8x256xf32, #tpu.memory_space<vmem>>, vector<8x256xf32>
    %c0_2 = arith.constant 0 : index
    %c0_3 = arith.constant 0 : index
    %4 = vector.load %arg4[%c0_2, %c0_3] : memref<8x256xf32, #tpu.memory_space<vmem>>, vector<8x256xf32>
    %c0_4 = arith.constant 0 : index
    %c0_5 = arith.constant 0 : index
    %c0_6 = arith.constant 0 : index
    %5 = vector.load %arg5[%c0_4, %c0_5, %c0_6] : memref<1x8x1xf32, #tpu.memory_space<vmem>>, vector<1x8x1xf32>
    %6 = arith.mulf %3, %4 : vector<8x256xf32>
    %cst = arith.constant dense<0.000000e+00> : vector<8xf32>
    %7 = vector.multi_reduction <add>, %6, %cst [1] : vector<8x256xf32> to vector<8xf32>
    %8 = vector.shape_cast %7 : vector<8xf32> to vector<8x1xf32>
    %9 = vector.shape_cast %8 : vector<8x1xf32> to vector<1x8x1xf32>
    %10 = arith.addf %5, %9 : vector<1x8x1xf32>
    %c0_7 = arith.constant 0 : index
    %c0_8 = arith.constant 0 : index
    %c0_9 = arith.constant 0 : index
    %11 = vector.load %arg5[%c0_7, %c0_8, %c0_9] : memref<1x8x1xf32, #tpu.memory_space<vmem>>, vector<1x8x1xf32>
    tpu.vector_store %arg5[%c0_7, %c0_8, %c0_9], %10 {strides = array<i32>} : memref<1x8x1xf32, #tpu.memory_space<vmem>>, vector<1x8x1xf32>,
    %c0_10 = arith.constant 0 : index
    %c0_11 = arith.constant 0 : index
    %c0_12 = arith.constant 0 : index
    %12 = vector.load %arg6[%c0_10, %c0_11, %c0_12] : memref<1x8x1xf32, #tpu.memory_space<vmem>>, vector<1x8x1xf32>
    %cst_13 = arith.constant dense<0.000000e+00> : vector<8xf32>
    %13 = vector.multi_reduction <add>, %3, %cst_13 [1] : vector<8x256xf32> to vector<8xf32>
    %14 = vector.shape_cast %13 : vector<8xf32> to vector<8x1xf32>
    %15 = vector.shape_cast %14 : vector<8x1xf32> to vector<1x8x1xf32>
    %16 = arith.addf %12, %15 : vector<1x8x1xf32>
    %c0_14 = arith.constant 0 : index
    %c0_15 = arith.constant 0 : index
    %c0_16 = arith.constant 0 : index
    %17 = vector.load %arg6[%c0_14, %c0_15, %c0_16] : memref<1x8x1xf32, #tpu.memory_space<vmem>>, vector<1x8x1xf32>
    tpu.vector_store %arg6[%c0_14, %c0_15, %c0_16], %16 {strides = array<i32>} : memref<1x8x1xf32, #tpu.memory_space<vmem>>, vector<1x8x1xf32>,
    %c0_17 = arith.constant 0 : index
    %c0_18 = arith.constant 0 : index
    %c0_19 = arith.constant 0 : index
    %18 = vector.load %arg7[%c0_17, %c0_18, %c0_19] : memref<1x8x1xf32, #tpu.memory_space<vmem>>, vector<1x8x1xf32>
    %cst_20 = arith.constant dense<0.000000e+00> : vector<8xf32>
    %19 = vector.multi_reduction <add>, %4, %cst_20 [1] : vector<8x256xf32> to vector<8xf32>
    %20 = vector.shape_cast %19 : vector<8xf32> to vector<8x1xf32>
    %21 = vector.shape_cast %20 : vector<8x1xf32> to vector<1x8x1xf32>
    %22 = arith.addf %18, %21 : vector<1x8x1xf32>
    %c0_21 = arith.constant 0 : index
    %c0_22 = arith.constant 0 : index
    %c0_23 = arith.constant 0 : index
    %23 = vector.load %arg7[%c0_21, %c0_22, %c0_23] : memref<1x8x1xf32, #tpu.memory_space<vmem>>, vector<1x8x1xf32>
    tpu.vector_store %arg7[%c0_21, %c0_22, %c0_23], %22 {strides = array<i32>} : memref<1x8x1xf32, #tpu.memory_space<vmem>>, vector<1x8x1xf32>,
    return
  }
  func.func @transform_0(%arg0: i32, %arg1: i32, %arg2: i32) -> (i32, i32) {
    %c1_i32 = arith.constant 1 : i32
    %0 = arith.muli %arg0, %c1_i32 : i32
    %1 = arith.addi %0, %arg2 : i32
    %c0_i32 = arith.constant 0 : i32
    return %arg1, %1 : i32, i32
  }
  func.func @transform_1(%arg0: i32, %arg1: i32, %arg2: i32) -> (i32, i32) {
    %c1_i32 = arith.constant 1 : i32
    %0 = arith.muli %arg0, %c1_i32 : i32
    %1 = arith.addi %0, %arg2 : i32
    %c0_i32 = arith.constant 0 : i32
    return %arg1, %1 : i32, i32
  }
  func.func @transform_2(%arg0: i32, %arg1: i32, %arg2: i32) -> (i32, i32, i32) {
    %c0_i32 = arith.constant 0 : i32
    %c0_i32_0 = arith.constant 0 : i32
    return %arg0, %arg1, %c0_i32 : i32, i32, i32
  }
  func.func @transform_3(%arg0: i32, %arg1: i32, %arg2: i32) -> (i32, i32, i32) {
    %c0_i32 = arith.constant 0 : i32
    %c0_i32_0 = arith.constant 0 : i32
    return %arg0, %arg1, %c0_i32 : i32, i32, i32
  }
  func.func @transform_4(%arg0: i32, %arg1: i32, %arg2: i32) -> (i32, i32, i32) {
    %c0_i32 = arith.constant 0 : i32
    %c0_i32_0 = arith.constant 0 : i32
    return %arg0, %arg1, %c0_i32 : i32, i32, i32
  }
}

</mosaic_0001>

<llo_original>
// kernel: tpu_custom_call.1
$region0: #{tpu_custom_call.1}
  #allocation0 [shape = 'u32[]', space=smem, size = 0x4, offset = 0x4, fixed_abs, tag = 'smem constant byte address 0x4 - core index']
  #allocation1 [shape = 'u32[144,128]{1,0:T(1,128)}', space=vmem, size = 0x12000, scoped, tag = 'internal scratch']
  %s0 = inlined_call_operand.hbm [shape: f32[8,256], index: 0, kind: input, shape index: {}]
  %s1 = inlined_call_operand.hbm [shape: f32[8,256], index: 1, kind: input, shape index: {}]
  %s2 = inlined_call_operand.vmem [shape: f32[1,8,1], index: 2, kind: output, shape index: {0}]
  %s3 = inlined_call_operand.vmem [shape: f32[1,8,1], index: 3, kind: output, shape index: {1}]
  %s4 = inlined_call_operand.vmem [shape: f32[1,8,1], index: 4, kind: output, shape index: {2}]
  %5 = xla_tuple %s2, %s3, %s4
  %s6 = sld [smem:[#allocation0]]
  $region46: #{tpu_custom_call.1} parent=0
    _
  %s8 = ssub.s32 1, %s6
  %s9 = scalar_select 0, %s8, %s6
  $region1: #{tpu_custom_call.1} parent=0
    #allocation2 [shape = 'u8[8192]{0}', space=vmem, size = 0x2000, scoped, tag = 'input window, operand 0, single buffered']
    #allocation3 [shape = 's32[1]{0}', space=sflag, size = 0x4, scoped, tag = 'scoped memory for tpu_custom_call.1']
    #allocation4 [shape = 'u8[8192]{0}', space=vmem, size = 0x2000, scoped, tag = 'input window, operand 1, single buffered']
    #allocation5 [shape = 's32[1]{0}', space=sflag, size = 0x4, scoped, tag = 'scoped memory for tpu_custom_call.1']
    %10 = vsyncpa [#allocation3], 0
    %11 = vsyncpa [#allocation5], 0
    // Predicated region
    $region2: #{tpu_custom_call.1} parent=1 // pred_check
      _
    $region3: #{tpu_custom_call.1} parent=1 // pred_check_branch
      %13 = sbr.rel (0) target = $region5
    $region4: #{tpu_custom_call.1} parent=1 // pred_region
      %s14 = sadd.s32 0, 0
      %s15 = smul.u32 2, %s14
      %s17 = ssub.s32 256, 256
      %18 = vsyncadd [#allocation3], %s17
      %s19 = smul.addr %s15, 128
      %s20 = scalar_lea.hbm %s0, %s19
      %s22 = sshll.u32 [#allocation2], 4
      %s23 = int_to_ptr.vmem [resolvable:$true] %s22
      %25 = dma.hbm_to_vmem [thread:$0]  %s20, 256, %s23, [#allocation3]
    $region5: #{tpu_custom_call.1} parent=1 // pred_fallthru
      _
    // Predicated region
    $region6: #{tpu_custom_call.1} parent=1 // pred_check
      _
    $region7: #{tpu_custom_call.1} parent=1 // pred_check_branch
      %27 = sbr.rel (0) target = $region9
    $region8: #{tpu_custom_call.1} parent=1 // pred_region
      %s28 = sadd.s32 0, 0
      %s29 = smul.u32 2, %s28
      %s31 = ssub.s32 256, 256
      %32 = vsyncadd [#allocation5], %s31
      %s33 = smul.addr %s29, 128
      %s34 = scalar_lea.hbm %s1, %s33
      %s36 = sshll.u32 [#allocation4], 4
      %s37 = int_to_ptr.vmem [resolvable:$true] %s36
      %39 = dma.hbm_to_vmem [thread:$0]  %s34, 256, %s37, [#allocation5]
    $region9: #{tpu_custom_call.1} parent=1 // pred_fallthru
      _
    // Predicated region
    $region10: #{tpu_custom_call.1} parent=1 // pred_check
      _
    $region11: #{tpu_custom_call.1} parent=1 // pred_check_branch
      %41 = sbr.rel (0) target = $region13
    $region12: #{tpu_custom_call.1} parent=1 // pred_region
      %42 = dma.done [#allocation3], 256
    $region13: #{tpu_custom_call.1} parent=1 // pred_fallthru
      _
    // Predicated region
    $region14: #{tpu_custom_call.1} parent=1 // pred_check
      _
    $region15: #{tpu_custom_call.1} parent=1 // pred_check_branch
      %44 = sbr.rel (0) target = $region17
    $region16: #{tpu_custom_call.1} parent=1 // pred_region
      %45 = dma.done [#allocation5], 256
    $region17: #{tpu_custom_call.1} parent=1 // pred_fallthru
      _
    %s46 = sadd.s32 0, 0
    %s47 = smul.u32 2, %s46
    %s48 = sadd.s32 0, 0
    %s49 = smul.u32 2, %s48
    %p50 = scmp.eq.s32.totalorder 0, 0
    // Predicated region
    $region18: #{tpu_custom_call.1} parent=1 // pred_check
      %p51 = pneg %p50
    $region19: #{tpu_custom_call.1} parent=1 // pred_check_branch
      %53 = sbr.rel (%p51) target = $region21
    $region20: #{tpu_custom_call.1} parent=1 // pred_region
      %vm54 = vcmask 7168
      %55 = vst.msk [vmem:[%s2] sm:$0xff] %vm54, 0.0
      %56 = vst.msk [vmem:[%s3] sm:$0xff] %vm54, 0.0
      %57 = vst.msk [vmem:[%s4] sm:$0xff] %vm54, 0.0
    $region21: #{tpu_custom_call.1} parent=1 // pred_fallthru
      _
    %v58 = vld [vmem:[#allocation2] sm:$0xff]
    %v59 = vld [vmem:[#allocation2 + $0x8] sm:$0xff]
    %v60 = vld [vmem:[#allocation4] sm:$0xff]
    %v61 = vld [vmem:[#allocation4 + $0x8] sm:$0xff]
    %v62 = vld [vmem:[%s2] sm:$0xff]
    %v63 = vmul.f32 %v58, %v60
    %v64 = vmul.f32 %v59, %v61
    %v65 = vadd.f32 %v63, %v64
    %66 = vadd.xlane.f32.xlu0 %v65
    %v67 = vpop.xlane.xlu0 %66
    %v68 = vadd.f32 %v62, %v67
    %vm69 = vcmask 7168
    %70 = vst.msk [vmem:[%s2] sm:$0xff] %vm69, %v68
    %v71 = vld [vmem:[%s3] sm:$0xff]
    %v72 = vadd.f32 %v58, %v59
    %73 = vadd.xlane.f32.xlu0 %v72
    %v74 = vpop.xlane.xlu0 %73
    %v75 = vadd.f32 %v71, %v74
    %76 = vst.msk [vmem:[%s3] sm:$0xff] %vm69, %v75
    %v77 = vld [vmem:[%s4] sm:$0xff]
    %v78 = vadd.f32 %v60, %v61
    %79 = vadd.xlane.f32.xlu0 %v78
    %v80 = vpop.xlane.xlu0 %79
    %v81 = vadd.f32 %v77, %v80
    %82 = vst.msk [vmem:[%s4] sm:$0xff] %vm69, %v81
    // Predicated region
    $region22: #{tpu_custom_call.1} parent=1 // pred_check
      _
    $region23: #{tpu_custom_call.1} parent=1 // pred_check_branch
      %84 = sbr.rel (0) target = $region25
    $region24: #{tpu_custom_call.1} parent=1 // pred_region
      _
    $region25: #{tpu_custom_call.1} parent=1 // pred_fallthru
      _
    // Predicated region
    $region26: #{tpu_custom_call.1} parent=1 // pred_check
      _
    $region27: #{tpu_custom_call.1} parent=1 // pred_check_branch
      %86 = sbr.rel (0) target = $region29
    $region28: #{tpu_custom_call.1} parent=1 // pred_region
      _
    $region29: #{tpu_custom_call.1} parent=1 // pred_fallthru
      _
    // Predicated region
    $region30: #{tpu_custom_call.1} parent=1 // pred_check
      _
    $region31: #{tpu_custom_call.1} parent=1 // pred_check_branch
      %88 = sbr.rel (0) target = $region33
    $region32: #{tpu_custom_call.1} parent=1 // pred_region
      _
    $region33: #{tpu_custom_call.1} parent=1 // pred_fallthru
      _
    // Predicated region
    $region34: #{tpu_custom_call.1} parent=1 // pred_check
      _
    $region35: #{tpu_custom_call.1} parent=1 // pred_check_branch
      %90 = sbr.rel (0) target = $region37
    $region36: #{tpu_custom_call.1} parent=1 // pred_region
      _
    $region37: #{tpu_custom_call.1} parent=1 // pred_fallthru
      _
    // Predicated region
    $region38: #{tpu_custom_call.1} parent=1 // pred_check
      _
    $region39: #{tpu_custom_call.1} parent=1 // pred_check_branch
      %92 = sbr.rel (0) target = $region41
    $region40: #{tpu_custom_call.1} parent=1 // pred_region
      _
    $region41: #{tpu_custom_call.1} parent=1 // pred_fallthru
      _
    // Predicated region
    $region42: #{tpu_custom_call.1} parent=1 // pred_check
      _
    $region43: #{tpu_custom_call.1} parent=1 // pred_check_branch
      %94 = sbr.rel (0) target = $region45
    $region44: #{tpu_custom_call.1} parent=1 // pred_region
      _
    $region45: #{tpu_custom_call.1} parent=1 // pred_fallthru
      _
    %95 = vsyncpa [#allocation3], 1
    %96 = vsyncpa [#allocation5], 1

</llo_original>
